<compile_context>
chip_gen: v7x
topology: tpu7x:2x2x1
jax: 0.10.0
libtpu: 0.0.40
codegen_flags: <defaults>
</compile_context>

<pallas_src>
import functools

import jax
import jax.numpy as jnp
from jax.experimental import pallas as pl
from jax.experimental.pallas import tpu as pltpu


def _adaptive_sampling_kernel(f_ref, p_ref, bn_scale_ref, bn_shift_ref,
                              w_ref, b_ref, fm_ref, pm_ref, *, in_eps):
    f = f_ref[0]                                                   # (C, N)

    # ---- InstanceNorm2d (affine=False): per-channel stats over the N points.
    mu = jnp.mean(f, axis=1, keepdims=True)                        # (C, 1)
    xc = f - mu
    var = jnp.mean(xc * xc, axis=1, keepdims=True)                 # biased variance
    xn = xc * jax.lax.rsqrt(var + in_eps)

    # ---- BatchNorm2d (eval mode, folded to scale/shift) + ReLU — pure VPU.
    y = jnp.maximum(xn * bn_scale_ref[...] + bn_shift_ref[...], 0.0)   # (C, N)

    # ---- 1x1 Conv2d == channel-mixing matmul: (S, C) @ (C, N) + bias.
    logits = jnp.dot(w_ref[...], y,
                     preferred_element_type=jnp.float32) + b_ref[...]  # (S, N)

    # ---- softmax over the N points (lane axis).
    m = jnp.max(logits, axis=1, keepdims=True)
    e = jnp.exp(logits - m)
    w = e / jnp.sum(e, axis=1, keepdims=True)                      # (S, N)

    # ---- pooled features / coordinates: contract the point axis on the MXU.
    fm_ref[0] = jax.lax.dot_general(f, w, (((1,), (1,)), ((), ())),
                                    preferred_element_type=jnp.float32)  # (C, S)
    pm_ref[0] = jax.lax.dot_general(p_ref[0], w, (((1,), (1,)), ((), ())),
                                    preferred_element_type=jnp.float32)  # (Dp, S)


def adaptive_sampling_forward(F, P, bn_gamma, bn_beta, bn_mean, bn_var,
                              conv_w, conv_b, *, in_eps=1e-3, bn_eps=1e-5):
    B, C, N = F.shape
    Dp = P.shape[1]
    S = conv_w.shape[0]

    # Fold eval-mode BatchNorm into per-channel scale/shift (column vectors so
    # they broadcast against the (C, N) tile inside the kernel).
    inv_std = 1.0 / jnp.sqrt(bn_var + bn_eps)
    bn_scale = (bn_gamma * inv_std).reshape(C, 1).astype(jnp.float32)
    bn_shift = (bn_beta - bn_mean * bn_gamma * inv_std).reshape(C, 1).astype(jnp.float32)
    conv_b_col = conv_b.reshape(S, 1).astype(jnp.float32)

    kernel = functools.partial(_adaptive_sampling_kernel, in_eps=in_eps)
    return pl.pallas_call(
        kernel,
        out_shape=(
            jax.ShapeDtypeStruct((B, C, S), jnp.float32),   # F_M
            jax.ShapeDtypeStruct((B, Dp, S), jnp.float32),  # P_M
        ),
        grid_spec=pltpu.PrefetchScalarGridSpec(
            num_scalar_prefetch=0,
            grid=(B,),
            in_specs=[
                pl.BlockSpec((1, C, N), lambda b: (b, 0, 0)),    # F
                pl.BlockSpec((1, Dp, N), lambda b: (b, 0, 0)),   # P
                pl.BlockSpec((C, 1), lambda b: (0, 0)),          # folded BN scale
                pl.BlockSpec((C, 1), lambda b: (0, 0)),          # folded BN shift
                pl.BlockSpec((S, C), lambda b: (0, 0)),          # conv weight
                pl.BlockSpec((S, 1), lambda b: (0, 0)),          # conv bias
            ],
            out_specs=[
                pl.BlockSpec((1, C, S), lambda b: (b, 0, 0)),    # F_M
                pl.BlockSpec((1, Dp, S), lambda b: (b, 0, 0)),   # P_M
            ],
        ),
        compiler_params=pltpu.CompilerParams(
            dimension_semantics=("parallel",)),
    )(F, P, bn_scale, bn_shift, conv_w, conv_b_col)


def reference_forward(F, P, bn_gamma, bn_beta, bn_mean, bn_var, conv_w, conv_b,
                      in_eps=1e-3, bn_eps=1e-5):
    # Pure-JAX reference mirroring the PyTorch forward (InstanceNorm -> eval BN
    # -> ReLU -> 1x1 conv -> softmax over points -> bmm pooling).
    hi = jax.lax.Precision.HIGHEST
    mu = jnp.mean(F, axis=2, keepdims=True)
    var = jnp.mean((F - mu) ** 2, axis=2, keepdims=True)
    xn = (F - mu) / jnp.sqrt(var + in_eps)
    scale = bn_gamma / jnp.sqrt(bn_var + bn_eps)
    shift = bn_beta - bn_mean * scale
    y = jnp.maximum(xn * scale[None, :, None] + shift[None, :, None], 0.0)
    logits = jnp.einsum("sc,bcn->bsn", conv_w, y, precision=hi) + conv_b[None, :, None]
    w = jax.nn.softmax(logits, axis=2)
    F_M = jnp.einsum("bcn,bsn->bcs", F, w, precision=hi)
    P_M = jnp.einsum("bpn,bsn->bps", P, w, precision=hi)
    return F_M, P_M


if __name__ == "__main__":
    # Module config: in_channel=8, num_sampling=16; B=2 batches of N=128 3-D points.
    B, C, N, S, Dp = 2, 8, 128, 16, 3

    key = jax.random.PRNGKey(0)
    kF, kP, kw, kb, kg, kbt, km, kv = jax.random.split(key, 8)

    F = jax.random.normal(kF, (B, C, N), dtype=jnp.float32)
    P = jax.random.normal(kP, (B, Dp, N), dtype=jnp.float32)

    # Deterministic synthetic parameters (not a checkpoint load).
    conv_w = 0.1 * jax.random.normal(kw, (S, C), dtype=jnp.float32)   # Conv2d weight[:, :, 0, 0]
    conv_b = 0.1 * jax.random.normal(kb, (S,), dtype=jnp.float32)
    bn_gamma = 1.0 + 0.1 * jax.random.normal(kg, (C,), dtype=jnp.float32)
    bn_beta = 0.1 * jax.random.normal(kbt, (C,), dtype=jnp.float32)
    bn_mean = 0.05 * jax.random.normal(km, (C,), dtype=jnp.float32)
    bn_var = 1.0 + 0.1 * jax.random.uniform(kv, (C,), dtype=jnp.float32)

    F_M, P_M = adaptive_sampling_forward(F, P, bn_gamma, bn_beta, bn_mean, bn_var,
                                         conv_w, conv_b)
    jax.block_until_ready((F_M, P_M))

    # Sanity check against the pure-JAX reference. Tolerance allows for the
    # MXU default-precision path vs the HIGHEST-precision XLA reference.
    F_ref, P_ref = reference_forward(F, P, bn_gamma, bn_beta, bn_mean, bn_var,
                                     conv_w, conv_b)
    assert F_M.shape == (B, C, S) and P_M.shape == (B, Dp, S)
    assert jnp.allclose(F_M, F_ref, atol=5e-3, rtol=1e-2)
    assert jnp.allclose(P_M, P_ref, atol=5e-3, rtol=1e-2)

    print("KERNEL_OK")
</pallas_src>

<mosaic_0001>
module attributes {stable_mosaic.version = 11 : i64} {
  func.func @_adaptive_sampling_kernel(%arg0: i32, %arg1: memref<1x8x128xf32, #tpu.memory_space<vmem>>, %arg2: memref<1x3x128xf32, #tpu.memory_space<vmem>>, %arg3: memref<8x1xf32, #tpu.memory_space<vmem>>, %arg4: memref<8x1xf32, #tpu.memory_space<vmem>>, %arg5: memref<16x8xf32, #tpu.memory_space<vmem>>, %arg6: memref<16x1xf32, #tpu.memory_space<vmem>>, %arg7: memref<1x8x16xf32, #tpu.memory_space<vmem>>, %arg8: memref<1x3x16xf32, #tpu.memory_space<vmem>>) attributes {dimension_semantics = [#tpu.dimension_semantics<parallel>], iteration_bounds = array<i64: 2>, scalar_prefetch = 0 : i64, scratch_operands = 0 : i64, tpu.core_type = #tpu.core_type<tc>, window_params = [{transform_indices = @transform_0, window_bounds = array<i64: 1, 8, 128>}, {transform_indices = @transform_1, window_bounds = array<i64: 1, 3, 128>}, {pipeline_mode = #tpu.pipeline_mode<synchronous>, transform_indices = @transform_2, window_bounds = array<i64: 8, 1>}, {pipeline_mode = #tpu.pipeline_mode<synchronous>, transform_indices = @transform_3, window_bounds = array<i64: 8, 1>}, {pipeline_mode = #tpu.pipeline_mode<synchronous>, transform_indices = @transform_4, window_bounds = array<i64: 16, 8>}, {pipeline_mode = #tpu.pipeline_mode<synchronous>, transform_indices = @transform_5, window_bounds = array<i64: 16, 1>}, {transform_indices = @transform_6, window_bounds = array<i64: 1, 8, 16>}, {transform_indices = @transform_7, window_bounds = array<i64: 1, 3, 16>}]} {
    %c0 = arith.constant 0 : index
    %c0_0 = arith.constant 0 : index
    %c0_1 = arith.constant 0 : index
    %0 = vector.load %arg1[%c0, %c0_0, %c0_1] : memref<1x8x128xf32, #tpu.memory_space<vmem>>, vector<1x8x128xf32>
    %1 = vector.shape_cast %0 : vector<1x8x128xf32> to vector<8x128xf32>
    %cst = arith.constant dense<0.000000e+00> : vector<8xf32>
    %2 = vector.multi_reduction <add>, %1, %cst [1] : vector<8x128xf32> to vector<8xf32>
    %3 = vector.shape_cast %2 : vector<8xf32> to vector<8x1xf32>
    %cst_2 = arith.constant 1.280000e+02 : f32
    %4 = vector.broadcast %cst_2 : f32 to vector<8x1xf32>
    %5 = arith.divf %3, %4 : vector<8x1xf32>
    %6 = vector.broadcast %5 : vector<8x1xf32> to vector<8x128xf32>
    %7 = arith.subf %1, %6 : vector<8x128xf32>
    %8 = arith.mulf %7, %7 : vector<8x128xf32>
    %cst_3 = arith.constant dense<0.000000e+00> : vector<8xf32>
    %9 = vector.multi_reduction <add>, %8, %cst_3 [1] : vector<8x128xf32> to vector<8xf32>
    %10 = vector.shape_cast %9 : vector<8xf32> to vector<8x1xf32>
    %cst_4 = arith.constant 1.280000e+02 : f32
    %11 = vector.broadcast %cst_4 : f32 to vector<8x1xf32>
    %12 = arith.divf %10, %11 : vector<8x1xf32>
    %cst_5 = arith.constant 1.000000e-03 : f32
    %13 = vector.broadcast %cst_5 : f32 to vector<8x1xf32>
    %14 = arith.addf %12, %13 : vector<8x1xf32>
    %15 = math.rsqrt %14 : vector<8x1xf32>
    %16 = vector.broadcast %15 : vector<8x1xf32> to vector<8x128xf32>
    %17 = arith.mulf %7, %16 : vector<8x128xf32>
    %c0_6 = arith.constant 0 : index
    %c0_7 = arith.constant 0 : index
    %18 = vector.load %arg3[%c0_6, %c0_7] : memref<8x1xf32, #tpu.memory_space<vmem>>, vector<8x1xf32>
    %19 = vector.broadcast %18 : vector<8x1xf32> to vector<8x128xf32>
    %20 = arith.mulf %17, %19 : vector<8x128xf32>
    %c0_8 = arith.constant 0 : index
    %c0_9 = arith.constant 0 : index
    %21 = vector.load %arg4[%c0_8, %c0_9] : memref<8x1xf32, #tpu.memory_space<vmem>>, vector<8x1xf32>
    %22 = vector.broadcast %21 : vector<8x1xf32> to vector<8x128xf32>
    %23 = arith.addf %20, %22 : vector<8x128xf32>
    %cst_10 = arith.constant 0.000000e+00 : f32
    %24 = vector.broadcast %cst_10 : f32 to vector<8x128xf32>
    %25 = arith.maximumf %23, %24 : vector<8x128xf32>
    %c0_11 = arith.constant 0 : index
    %c0_12 = arith.constant 0 : index
    %26 = vector.load %arg5[%c0_11, %c0_12] : memref<16x8xf32, #tpu.memory_space<vmem>>, vector<16x8xf32>
    %cst_13 = arith.constant dense<0.000000e+00> : vector<16x128xf32>
    %27 = tpu.matmul %26, %25, %cst_13 {dimension_numbers = #tpu.dot_dimension_numbers<[1], [0], [0], [1], [0, 0, 1, 1], [], []>} : vector<16x8xf32>, vector<8x128xf32>, vector<16x128xf32> -> vector<16x128xf32>
    %c0_14 = arith.constant 0 : index
    %c0_15 = arith.constant 0 : index
    %28 = vector.load %arg6[%c0_14, %c0_15] : memref<16x1xf32, #tpu.memory_space<vmem>>, vector<16x1xf32>
    %29 = vector.broadcast %28 : vector<16x1xf32> to vector<16x128xf32>
    %30 = arith.addf %27, %29 : vector<16x128xf32>
    %cst_16 = arith.constant dense<0xFF800000> : vector<16xf32>
    %31 = vector.multi_reduction <maximumf>, %30, %cst_16 [1] : vector<16x128xf32> to vector<16xf32>
    %32 = vector.shape_cast %31 : vector<16xf32> to vector<16x1xf32>
    %33 = vector.broadcast %32 : vector<16x1xf32> to vector<16x128xf32>
    %34 = arith.subf %30, %33 : vector<16x128xf32>
    %35 = math.exp %34 : vector<16x128xf32>
    %cst_17 = arith.constant dense<0.000000e+00> : vector<16xf32>
    %36 = vector.multi_reduction <add>, %35, %cst_17 [1] : vector<16x128xf32> to vector<16xf32>
    %37 = vector.shape_cast %36 : vector<16xf32> to vector<16x1xf32>
    %38 = vector.broadcast %37 : vector<16x1xf32> to vector<16x128xf32>
    %39 = arith.divf %35, %38 : vector<16x128xf32>
    %cst_18 = arith.constant dense<0.000000e+00> : vector<8x16xf32>
    %40 = tpu.matmul %1, %39, %cst_18 {dimension_numbers = #tpu.dot_dimension_numbers<[1], [1], [0], [0], [0, 0, 1, 0], [], []>} : vector<8x128xf32>, vector<16x128xf32>, vector<8x16xf32> -> vector<8x16xf32>
    %c0_19 = arith.constant 0 : index
    %c0_20 = arith.constant 0 : index
    %c0_21 = arith.constant 0 : index
    %41 = vector.load %arg7[%c0_19, %c0_20, %c0_21] : memref<1x8x16xf32, #tpu.memory_space<vmem>>, vector<1x8x16xf32>
    %42 = vector.shape_cast %41 : vector<1x8x16xf32> to vector<8x16xf32>
    %43 = vector.shape_cast %40 : vector<8x16xf32> to vector<1x8x16xf32>
    tpu.vector_store %arg7[%c0_19, %c0_20, %c0_21], %43 {strides = array<i32>} : memref<1x8x16xf32, #tpu.memory_space<vmem>>, vector<1x8x16xf32>,
    %c0_22 = arith.constant 0 : index
    %c0_23 = arith.constant 0 : index
    %c0_24 = arith.constant 0 : index
    %44 = vector.load %arg2[%c0_22, %c0_23, %c0_24] : memref<1x3x128xf32, #tpu.memory_space<vmem>>, vector<1x3x128xf32>
    %45 = vector.shape_cast %44 : vector<1x3x128xf32> to vector<3x128xf32>
    %cst_25 = arith.constant dense<0.000000e+00> : vector<3x16xf32>
    %46 = tpu.matmul %45, %39, %cst_25 {dimension_numbers = #tpu.dot_dimension_numbers<[1], [1], [0], [0], [0, 0, 1, 0], [], []>} : vector<3x128xf32>, vector<16x128xf32>, vector<3x16xf32> -> vector<3x16xf32>
    %c0_26 = arith.constant 0 : index
    %c0_27 = arith.constant 0 : index
    %c0_28 = arith.constant 0 : index
    %47 = vector.load %arg8[%c0_26, %c0_27, %c0_28] : memref<1x3x16xf32, #tpu.memory_space<vmem>>, vector<1x3x16xf32>
    %48 = vector.shape_cast %47 : vector<1x3x16xf32> to vector<3x16xf32>
    %49 = vector.shape_cast %46 : vector<3x16xf32> to vector<1x3x16xf32>
    tpu.vector_store %arg8[%c0_26, %c0_27, %c0_28], %49 {strides = array<i32>} : memref<1x3x16xf32, #tpu.memory_space<vmem>>, vector<1x3x16xf32>,
    return
  }
  func.func @transform_0(%arg0: i32) -> (i32, i32, i32) {
    %c0_i32 = arith.constant 0 : i32
    %c0_i32_0 = arith.constant 0 : i32
    %c0_i32_1 = arith.constant 0 : i32
    return %arg0, %c0_i32, %c0_i32_0 : i32, i32, i32
  }
  func.func @transform_1(%arg0: i32) -> (i32, i32, i32) {
    %c0_i32 = arith.constant 0 : i32
    %c0_i32_0 = arith.constant 0 : i32
    %c0_i32_1 = arith.constant 0 : i32
    return %arg0, %c0_i32, %c0_i32_0 : i32, i32, i32
  }
  func.func @transform_2(%arg0: i32) -> (i32, i32) {
    %c0_i32 = arith.constant 0 : i32
    %c0_i32_0 = arith.constant 0 : i32
    %c0_i32_1 = arith.constant 0 : i32
    return %c0_i32, %c0_i32_0 : i32, i32
  }
  func.func @transform_3(%arg0: i32) -> (i32, i32) {
    %c0_i32 = arith.constant 0 : i32
    %c0_i32_0 = arith.constant 0 : i32
    %c0_i32_1 = arith.constant 0 : i32
    return %c0_i32, %c0_i32_0 : i32, i32
  }
  func.func @transform_4(%arg0: i32) -> (i32, i32) {
    %c0_i32 = arith.constant 0 : i32
    %c0_i32_0 = arith.constant 0 : i32
    %c0_i32_1 = arith.constant 0 : i32
    return %c0_i32, %c0_i32_0 : i32, i32
  }
  func.func @transform_5(%arg0: i32) -> (i32, i32) {
    %c0_i32 = arith.constant 0 : i32
    %c0_i32_0 = arith.constant 0 : i32
    %c0_i32_1 = arith.constant 0 : i32
    return %c0_i32, %c0_i32_0 : i32, i32
  }
  func.func @transform_6(%arg0: i32) -> (i32, i32, i32) {
    %c0_i32 = arith.constant 0 : i32
    %c0_i32_0 = arith.constant 0 : i32
    %c0_i32_1 = arith.constant 0 : i32
    return %arg0, %c0_i32, %c0_i32_0 : i32, i32, i32
  }
  func.func @transform_7(%arg0: i32) -> (i32, i32, i32) {
    %c0_i32 = arith.constant 0 : i32
    %c0_i32_0 = arith.constant 0 : i32
    %c0_i32_1 = arith.constant 0 : i32
    return %arg0, %c0_i32, %c0_i32_0 : i32, i32, i32
  }
}

</mosaic_0001>

<llo_original>
// kernel: tpu_custom_call.1
$region0: #{tpu_custom_call.1}
  #allocation0 [shape = 'u32[]', space=smem, size = 0x4, offset = 0x4, fixed_abs, tag = 'smem constant byte address 0x4 - core index']
  #allocation1 [shape = 'u32[144,128]{1,0:T(1,128)}', space=vmem, size = 0x12000, scoped, tag = 'internal scratch']
  %s0 = inlined_call_operand.vmem [shape: f32[2,8,128], index: 0, kind: input, shape index: {}]
  %s1 = inlined_call_operand.vmem [shape: f32[2,3,128], index: 1, kind: input, shape index: {}]
  %s2 = inlined_call_operand.vmem [shape: f32[8,1], index: 2, kind: input, shape index: {}]
  %s3 = inlined_call_operand.vmem [shape: f32[8,1], index: 3, kind: input, shape index: {}]
  %s4 = inlined_call_operand.vmem [shape: f32[16,8], index: 4, kind: input, shape index: {}]
  %s5 = inlined_call_operand.vmem [shape: f32[16,1], index: 5, kind: input, shape index: {}]
  %s6 = inlined_call_operand.hbm [shape: f32[2,8,16], index: 6, kind: output, shape index: {0}]
  %s7 = inlined_call_operand.vmem [shape: f32[2,3,16], index: 7, kind: output, shape index: {1}]
  %8 = xla_tuple %s6, %s7
  %s9 = sld [smem:[#allocation0]]
  $region65: #{tpu_custom_call.1} parent=0
    _
  %s11 = ssub.s32 1, %s9
  %s12 = scalar_select 0, %s11, %s9
  $region1: #{tpu_custom_call.1} parent=0
    #allocation2 [shape = 'u8[8192]{0}', space=vmem, size = 0x2000, scoped, tag = 'output window, operand 0']
    #allocation3 [shape = 's32[2]{0}', space=sflag, size = 0x8, scoped, tag = 'scoped memory for tpu_custom_call.1']
    %13 = vsyncpa [#allocation3], 0
    %s14 = scalar_lea.sflag [#allocation3], 1
    %15 = vsyncpa %s14, 0
    loop: start=0, step=1, limit=4
    $region2: #{tpu_custom_call.1} parent=1 // loop_pre_header
      _
    $region3: #{tpu_custom_call.1} parent=1 // loop_header
      %s17 = sphi 0, %s21
      %p18 = scmp.ge.s32.totalorder %s17, 4
      %s27 = sphi 0, %s29
      %s30 = sphi 0, %s27
      %s31 = sphi 0, %s30
      %s47 = sphi 0, %s31
      %s53 = sphi 0, %s55
      %s56 = sphi 0, %s53
      %s57 = sphi 0, %s56
      %s73 = sphi 0, %s57
      %s77 = sphi 0, %s77
      %s79 = sphi 0, %s77
      %s80 = sphi 0, %s79
      %s94 = sphi 0, %s80
      %s98 = sphi 0, %s98
      %s100 = sphi 0, %s98
      %s101 = sphi 0, %s100
      %s115 = sphi 0, %s101
      %s119 = sphi 0, %s119
      %s121 = sphi 0, %s119
      %s122 = sphi 0, %s121
      %s136 = sphi 0, %s122
      %s140 = sphi 0, %s140
      %s142 = sphi 0, %s140
      %s143 = sphi 0, %s142
      %s157 = sphi 0, %s143
      %s163 = sphi 0, %s165
      %s166 = sphi 0, %s163
      %s167 = sphi 0, %s166
      %s183 = sphi 0, %s167
      %s189 = sphi 0, %s191
      %s192 = sphi 0, %s189
      %s193 = sphi 0, %s192
      %s209 = sphi 0, %s193
    $region4: #{tpu_custom_call.1} parent=1 // loop_header_branch
      %20 = sbr.rel (%p18) target = $region8
    $region5: #{tpu_custom_call.1} parent=1 // loop_body
      %s22 = ssub.s32 %s17, 1
      %s23 = ssub.s32 %s17, 2
      %s24 = sadd.s32 %s17, 1
      %s25 = ssub.s32 %s17, %s24
      %p26 = scmp.eq.s32.totalorder %s25, 0
      %s28 = sadd.s32 %s27, 1
      %s29 = scalar_select %p26, %s27, %s28
      %p32 = pneg %p26
      %p33 = scmp.eq.s32.totalorder %s17, 1
      %p34 = por %p32, %p33
      %p35 = scmp.ne.s32.totalorder %s27, %s30
      %p36 = scmp.eq.s32.totalorder %s17, 0
      %p37 = por %p35, %p36
      %p38 = scmp.ne.s32.totalorder %s27, %s30
      %p39 = scmp.eq.s32.totalorder %s22, 1
      %p40 = por %p38, %p39
      %p41 = scmp.ne.s32.totalorder %s30, %s31
      %p42 = scmp.eq.s32.totalorder %s22, 0
      %p43 = por %p41, %p42
      %p44 = scmp.ne.s32.totalorder %s30, %s31
      %p45 = scmp.eq.s32.totalorder %s23, 1
      %p46 = por %p44, %p45
      %p48 = scmp.ne.s32.totalorder %s31, %s47
      %p49 = scmp.eq.s32.totalorder %s23, 0
      %p50 = por %p48, %p49
      %s51 = ssub.s32 %s17, %s24
      %p52 = scmp.eq.s32.totalorder %s51, 0
      %s54 = sadd.s32 %s53, 1
      %s55 = scalar_select %p52, %s53, %s54
      %p58 = pneg %p52
      %p59 = scmp.eq.s32.totalorder %s17, 1
      %p60 = por %p58, %p59
      %p61 = scmp.ne.s32.totalorder %s53, %s56
      %p62 = scmp.eq.s32.totalorder %s17, 0
      %p63 = por %p61, %p62
      %p64 = scmp.ne.s32.totalorder %s53, %s56
      %p65 = scmp.eq.s32.totalorder %s22, 1
      %p66 = por %p64, %p65
      %p67 = scmp.ne.s32.totalorder %s56, %s57
      %p68 = scmp.eq.s32.totalorder %s22, 0
      %p69 = por %p67, %p68
      %p70 = scmp.ne.s32.totalorder %s56, %s57
      %p71 = scmp.eq.s32.totalorder %s23, 1
      %p72 = por %p70, %p71
      %p74 = scmp.ne.s32.totalorder %s57, %s73
      %p75 = scmp.eq.s32.totalorder %s23, 0
      %p76 = por %p74, %p75
      %s78 = sadd.s32 %s77, 1
      %p81 = scmp.eq.s32.totalorder %s17, 1
      %p82 = scmp.ne.s32.totalorder %s77, %s79
      %p83 = scmp.eq.s32.totalorder %s17, 0
      %p84 = por %p82, %p83
      %p85 = scmp.ne.s32.totalorder %s77, %s79
      %p86 = scmp.eq.s32.totalorder %s22, 1
      %p87 = por %p85, %p86
      %p88 = scmp.ne.s32.totalorder %s79, %s80
      %p89 = scmp.eq.s32.totalorder %s22, 0
      %p90 = por %p88, %p89
      %p91 = scmp.ne.s32.totalorder %s79, %s80
      %p92 = scmp.eq.s32.totalorder %s23, 1
      %p93 = por %p91, %p92
      %p95 = scmp.ne.s32.totalorder %s80, %s94
      %p96 = scmp.eq.s32.totalorder %s23, 0
      %p97 = por %p95, %p96
      %s99 = sadd.s32 %s98, 1
      %p102 = scmp.eq.s32.totalorder %s17, 1
      %p103 = scmp.ne.s32.totalorder %s98, %s100
      %p104 = scmp.eq.s32.totalorder %s17, 0
      %p105 = por %p103, %p104
      %p106 = scmp.ne.s32.totalorder %s98, %s100
      %p107 = scmp.eq.s32.totalorder %s22, 1
      %p108 = por %p106, %p107
      %p109 = scmp.ne.s32.totalorder %s100, %s101
      %p110 = scmp.eq.s32.totalorder %s22, 0
      %p111 = por %p109, %p110
      %p112 = scmp.ne.s32.totalorder %s100, %s101
      %p113 = scmp.eq.s32.totalorder %s23, 1
      %p114 = por %p112, %p113
      %p116 = scmp.ne.s32.totalorder %s101, %s115
      %p117 = scmp.eq.s32.totalorder %s23, 0
      %p118 = por %p116, %p117
      %s120 = sadd.s32 %s119, 1
      %p123 = scmp.eq.s32.totalorder %s17, 1
      %p124 = scmp.ne.s32.totalorder %s119, %s121
      %p125 = scmp.eq.s32.totalorder %s17, 0
      %p126 = por %p124, %p125
      %p127 = scmp.ne.s32.totalorder %s119, %s121
      %p128 = scmp.eq.s32.totalorder %s22, 1
      %p129 = por %p127, %p128
      %p130 = scmp.ne.s32.totalorder %s121, %s122
      %p131 = scmp.eq.s32.totalorder %s22, 0
      %p132 = por %p130, %p131
      %p133 = scmp.ne.s32.totalorder %s121, %s122
      %p134 = scmp.eq.s32.totalorder %s23, 1
      %p135 = por %p133, %p134
      %p137 = scmp.ne.s32.totalorder %s122, %s136
      %p138 = scmp.eq.s32.totalorder %s23, 0
      %p139 = por %p137, %p138
      %s141 = sadd.s32 %s140, 1
      %p144 = scmp.eq.s32.totalorder %s17, 1
      %p145 = scmp.ne.s32.totalorder %s140, %s142
      %p146 = scmp.eq.s32.totalorder %s17, 0
      %p147 = por %p145, %p146
      %p148 = scmp.ne.s32.totalorder %s140, %s142
      %p149 = scmp.eq.s32.totalorder %s22, 1
      %p150 = por %p148, %p149
      %p151 = scmp.ne.s32.totalorder %s142, %s143
      %p152 = scmp.eq.s32.totalorder %s22, 0
      %p153 = por %p151, %p152
      %p154 = scmp.ne.s32.totalorder %s142, %s143
      %p155 = scmp.eq.s32.totalorder %s23, 1
      %p156 = por %p154, %p155
      %p158 = scmp.ne.s32.totalorder %s143, %s157
      %p159 = scmp.eq.s32.totalorder %s23, 0
      %p160 = por %p158, %p159
      %s161 = ssub.s32 %s17, %s24
      %p162 = scmp.eq.s32.totalorder %s161, 0
      %s164 = sadd.s32 %s163, 1
      %s165 = scalar_select %p162, %s163, %s164
      %p168 = pneg %p162
      %p169 = scmp.eq.s32.totalorder %s17, 1
      %p170 = por %p168, %p169
      %p171 = scmp.ne.s32.totalorder %s163, %s166
      %p172 = scmp.eq.s32.totalorder %s17, 0
      %p173 = por %p171, %p172
      %p174 = scmp.ne.s32.totalorder %s163, %s166
      %p175 = scmp.eq.s32.totalorder %s22, 1
      %p176 = por %p174, %p175
      %p177 = scmp.ne.s32.totalorder %s166, %s167
      %p178 = scmp.eq.s32.totalorder %s22, 0
      %p179 = por %p177, %p178
      %p180 = scmp.ne.s32.totalorder %s166, %s167
      %p181 = scmp.eq.s32.totalorder %s23, 1
      %p182 = por %p180, %p181
      %p184 = scmp.ne.s32.totalorder %s167, %s183
      %p185 = scmp.eq.s32.totalorder %s23, 0
      %p186 = por %p184, %p185
      %s187 = ssub.s32 %s17, %s24
      %p188 = scmp.eq.s32.totalorder %s187, 0
      %s190 = sadd.s32 %s189, 1
      %s191 = scalar_select %p188, %s189, %s190
      %p194 = pneg %p188
      %p195 = scmp.eq.s32.totalorder %s17, 1
      %p196 = por %p194, %p195
      %p197 = scmp.ne.s32.totalorder %s189, %s192
      %p198 = scmp.eq.s32.totalorder %s17, 0
      %p199 = por %p197, %p198
      %p200 = scmp.ne.s32.totalorder %s189, %s192
      %p201 = scmp.eq.s32.totalorder %s22, 1
      %p202 = por %p200, %p201
      %p203 = scmp.ne.s32.totalorder %s192, %s193
      %p204 = scmp.eq.s32.totalorder %s22, 0
      %p205 = por %p203, %p204
      %p206 = scmp.ne.s32.totalorder %s192, %s193
      %p207 = scmp.eq.s32.totalorder %s23, 1
      %p208 = por %p206, %p207
      %p210 = scmp.ne.s32.totalorder %s193, %s209
      %p211 = scmp.eq.s32.totalorder %s23, 0
      %p212 = por %p210, %p211
      %p213 = scmp.le.s32.totalorder 1, %s17
      %p214 = scmp.lt.s32.totalorder %s17, 3
      %p215 = pnand %p213, %p214
      %p216 = pneg %p215
      // Predicated region
      $region9: #{tpu_custom_call.1} parent=5 // pred_check
        _
      $region10: #{tpu_custom_call.1} parent=5 // pred_check_branch
        %218 = sbr.rel (%p215) target = $region12
      $region11: #{tpu_custom_call.1} parent=5 // pred_region
        %s219 = ssub.s32 %s17, 1
        // Predicated region
        $region13: #{tpu_custom_call.1} parent=11 // pred_check
          %p220 = pneg %p90
        $region14: #{tpu_custom_call.1} parent=11 // pred_check_branch
          %222 = sbr.rel (%p220) target = $region16
        $region15: #{tpu_custom_call.1} parent=11 // pred_region
          _
        $region16: #{tpu_custom_call.1} parent=11 // pred_fallthru
          _
        // Predicated region
        $region17: #{tpu_custom_call.1} parent=11 // pred_check
          %p223 = pneg %p111
        $region18: #{tpu_custom_call.1} parent=11 // pred_check_branch
          %225 = sbr.rel (%p223) target = $region20
        $region19: #{tpu_custom_call.1} parent=11 // pred_region
          _
        $region20: #{tpu_custom_call.1} parent=11 // pred_fallthru
          _
        // Predicated region
        $region21: #{tpu_custom_call.1} parent=11 // pred_check
          %p226 = pneg %p132
        $region22: #{tpu_custom_call.1} parent=11 // pred_check_branch
          %228 = sbr.rel (%p226) target = $region24
        $region23: #{tpu_custom_call.1} parent=11 // pred_region
          _
        $region24: #{tpu_custom_call.1} parent=11 // pred_fallthru
          _
        // Predicated region
        $region25: #{tpu_custom_call.1} parent=11 // pred_check
          %p229 = pneg %p153
        $region26: #{tpu_custom_call.1} parent=11 // pred_check_branch
          %231 = sbr.rel (%p229) target = $region28
        $region27: #{tpu_custom_call.1} parent=11 // pred_region
          _
        $region28: #{tpu_custom_call.1} parent=11 // pred_fallthru
          _
      $region12: #{tpu_custom_call.1} parent=5 // pred_fallthru
        _
      %p232 = scmp.lt.s32.totalorder %s17, 2
      // Predicated region
      $region29: #{tpu_custom_call.1} parent=5 // pred_check
        %p233 = pneg %p232
      $region30: #{tpu_custom_call.1} parent=5 // pred_check_branch
        %235 = sbr.rel (%p233) target = $region32
      $region31: #{tpu_custom_call.1} parent=5 // pred_region
        // Predicated region
        $region33: #{tpu_custom_call.1} parent=31 // pred_check
          %p236 = pneg %p37
        $region34: #{tpu_custom_call.1} parent=31 // pred_check_branch
          %238 = sbr.rel (%p236) target = $region36
        $region35: #{tpu_custom_call.1} parent=31 // pred_region
          %p239 = scmp.lt.s32.totalorder %s17, 1
          %s240 = scalar_select %p239, %s17, 1
          %s241 = smul.addr %s240, 8
          %s242 = scalar_lea.vmem %s0, %s241
        $region36: #{tpu_custom_call.1} parent=31 // pred_fallthru
          _
        // Predicated region
        $region37: #{tpu_custom_call.1} parent=31 // pred_check
          %p243 = pneg %p63
        $region38: #{tpu_custom_call.1} parent=31 // pred_check_branch
          %245 = sbr.rel (%p243) target = $region40
        $region39: #{tpu_custom_call.1} parent=31 // pred_region
          %p246 = scmp.lt.s32.totalorder %s17, 1
          %s247 = scalar_select %p246, %s17, 1
          %s248 = smul.addr %s247, 4
          %s249 = scalar_lea.vmem %s1, %s248
        $region40: #{tpu_custom_call.1} parent=31 // pred_fallthru
          _
      $region32: #{tpu_custom_call.1} parent=5 // pred_fallthru
        _
      %p250 = scmp.le.s32.totalorder 1, %s17
      %p251 = scmp.lt.s32.totalorder %s17, 3
      %p252 = pnand %p250, %p251
      %p253 = pneg %p252
      // Predicated region
      $region41: #{tpu_custom_call.1} parent=5 // pred_check
        _
      $region42: #{tpu_custom_call.1} parent=5 // pred_check_branch
        %255 = sbr.rel (%p252) target = $region44
      $region43: #{tpu_custom_call.1} parent=5 // pred_region
        %s256 = ssub.s32 %s17, 1
        %p257 = scmp.lt.s32.totalorder %s22, 1
        %s258 = scalar_select %p257, %s22, 1
        %s259 = smul.addr %s258, 8
        %s260 = scalar_lea.vmem %s0, %s259
        %p261 = pneg %p43
        %p262 = pneg %p40
        %p263 = scmp.lt.s32.totalorder %s22, 1
        %s264 = scalar_select %p263, %s22, 1
        %s265 = smul.addr %s264, 4
        %s266 = scalar_lea.vmem %s1, %s265
        %p267 = pneg %p69
        %p268 = pneg %p66
        %p269 = pneg %p90
        %p270 = pneg %p87
        %p271 = pneg %p111
        %p272 = pneg %p108
        %p273 = pneg %p132
        %p274 = pneg %p129
        %p275 = pneg %p153
        %p276 = pneg %p150
        %p277 = pneg %p179
        %p278 = pneg %p176
        %s279 = sand.u32 %s166, 1
        %s280 = scalar_lea.sflag [#allocation3], %s279
        %s281 = sand.u32 %s166, 1
        %s282 = smul.addr %s281, 8
        %s283 = scalar_lea.vmem [#allocation2], %s282
        %p284 = pneg %p205
        %p285 = pneg %p202
        %p286 = scmp.lt.s32.totalorder %s22, 1
        %s287 = scalar_select %p286, %s22, 1
        %s288 = smul.addr %s287, 4
        %s289 = scalar_lea.vmem %s7, %s288
        %p290 = scmp.lt.s32.totalorder %s22, 1
        %s291 = scalar_select %p290, %s22, 1
        %s292 = smul.addr %s291, 8
        %s293 = scalar_lea.vmem %s0, %s292
        %p294 = scmp.lt.s32.totalorder %s22, 1
        %s295 = scalar_select %p294, %s22, 1
        %s296 = smul.addr %s295, 4
        %s297 = scalar_lea.vmem %s1, %s296
        %p298 = scmp.lt.s32.totalorder %s22, 1
        %s299 = scalar_select %p298, %s22, 1
        %s300 = smul.addr %s299, 4
        %s301 = scalar_lea.vmem %s7, %s300
        %v302 = vld [vmem:[%s293] sm:$0xff]
        %303 = vadd.xlane.f32.xlu0 %v302
        %v304 = vpop.xlane.xlu0 %303
        %v305 = vrcp.pop 128.0
        %v306 = vmul.f32 %v304, %v305
        %v307 = vsub.f32 %v302, %v306
        %v308 = vmul.f32 %v307, %v307
        %309 = vadd.xlane.f32.xlu0 %v308
        %v310 = vpop.xlane.xlu0 %309
        %v311 = vmul.f32 %v310, %v305
        %v312 = vadd.f32 %v311, 0.001
        %v313 = vrsqrt.pop %v312
        %v314 = vmul.f32 %v307, %v313
        %v315 = vld [vmem:[%s2] sm:$0xff]
        %317 = vset.pattern.permute.xlu0 0
        %318 = vperm.xlu0 %317, %v315
        %v319 = vpop.permute.xlu0 %318
        %v321 = vmul.f32 %v314, %v319
        %v322 = vld [vmem:[%s3] sm:$0xff]
        %324 = vset.pattern.permute.xlu0 0
        %325 = vperm.xlu0 %324, %v322
        %v326 = vpop.permute.xlu0 %325
        %v328 = vadd.f32 %v321, %v326
        %v329 = vmax.f32 %v328, 0.0
        %v330 = vld [vmem:[%s4] sm:$0xff]
        %v331 = vld [vmem:[%s4 + $0x8] sm:$0xff]
        %v332 = vld [vmem:[%s5] sm:$0xff]
        %v333 = vld [vmem:[%s5 + $0x8] sm:$0xff]
        %335 = vset.pattern.permute.xlu0 0
        %336 = vperm.xlu0 %335, %v332
        %v337 = vpop.permute.xlu0 %336
        %340 = vset.pattern.permute.xlu0 0
        %341 = vperm.xlu0 %340, %v333
        %v342 = vpop.permute.xlu0 %341
        %vm344 = vcmask 64512
        %v346 = vsel %vm344, %v330, 0
        %v349 = vsel %vm344, %v331, 0
        %351 = vmatprep.subr.mxu0 0.0
        %352 = vmatpush1.msra.mxu0 %v329
        %353 = vmatprep.subr.mxu0 0.0
        %354 = vmatpush1.msra.mxu0 0.0
        %355 = vmatprep.subr.mxu0 0.0
        %356 = vmatpush1.msra.mxu0 0.0
        %357 = vmatprep.subr.mxu0 0.0
        %358 = vmatpush1.msra.mxu0 0.0
        %359 = vmatprep.subr.mxu0 0.0
        %360 = vmatpush1.msra.mxu0 0.0
        %361 = vmatprep.subr.mxu0 0.0
        %362 = vmatpush1.msra.mxu0 0.0
        %363 = vmatprep.subr.mxu0 0.0
        %364 = vmatpush1.msra.mxu0 0.0
        %365 = vmatprep.subr.mxu0 0.0
        %366 = vmatpush1.msra.mxu0 0.0
        %367 = vmatprep.subr.mxu0 0.0
        %368 = vmatpush1.msra.mxu0 0.0
        %369 = vmatprep.subr.mxu0 0.0
        %370 = vmatpush1.msra.mxu0 0.0
        %371 = vmatprep.subr.mxu0 0.0
        %372 = vmatpush1.msra.mxu0 0.0
        %373 = vmatprep.subr.mxu0 0.0
        %374 = vmatpush1.msra.mxu0 0.0
        %375 = vmatprep.subr.mxu0 0.0
        %376 = vmatpush1.msra.mxu0 0.0
        %377 = vmatprep.subr.mxu0 0.0
        %378 = vmatpush1.msra.mxu0 0.0
        %379 = vmatprep.subr.mxu0 0.0
        %380 = vmatpush1.msra.mxu0 0.0
        %381 = vmatprep.subr.mxu0 0.0
        %382 = vmatpush1.msra.mxu0 0.0
        %383 = vmatprep.subr.mxu0 0.0
        %384 = vmatpush1.msra.mxu0 0.0
        %385 = vmatprep.subr.mxu0 0.0
        %386 = vmatpush1.msra.mxu0 0.0
        %387 = vmatprep.subr.mxu0 0.0
        %388 = vmatpush1.msra.mxu0 0.0
        %389 = vmatprep.subr.mxu0 0.0
        %390 = vmatpush1.msra.mxu0 0.0
        %391 = vmatprep.subr.mxu0 0.0
        %392 = vmatpush1.msra.mxu0 0.0
        %393 = vmatprep.subr.mxu0 0.0
        %394 = vmatpush1.msra.mxu0 0.0
        %395 = vmatprep.subr.mxu0 0.0
        %396 = vmatpush1.msra.mxu0 0.0
        %397 = vmatprep.subr.mxu0 0.0
        %398 = vmatpush1.msra.mxu0 0.0
        %399 = vmatprep.subr.mxu0 0.0
        %400 = vmatpush1.msra.mxu0 0.0
        %401 = vmatprep.subr.mxu0 0.0
        %402 = vmatpush1.msra.mxu0 0.0
        %403 = vmatprep.subr.mxu0 0.0
        %404 = vmatpush1.msra.mxu0 0.0
        %405 = vmatprep.subr.mxu0 0.0
        %406 = vmatpush1.msra.mxu0 0.0
        %407 = vmatprep.subr.mxu0 0.0
        %408 = vmatpush1.msra.mxu0 0.0
        %409 = vmatprep.subr.mxu0 0.0
        %410 = vmatpush1.msra.mxu0 0.0
        %411 = vmatprep.subr.mxu0 0.0
        %412 = vmatpush1.msra.mxu0 0.0
        %413 = vmatprep.subr.mxu0 0.0
        %414 = vmatpush1.msra.mxu0 0.0
        %415 = vmatprep.mubr.f32.mxu0 0.0
        %416 = vmatmul.mubr.f32.gmra.mrb[0].mxu0 %v346
        %v417 = vpop.f32.mrb[0].mxu0
        %v418 = vadd.f32 %v337, %v417
        %v419 = vpop.f32.mrb[0].mxu0
        %420 = vmatprep.mubr.f32.mxu0 0.0
        %421 = vmatmul.mubr.f32.gmra.mrb[0].mxu0 %v349
        %v422 = vpop.f32.mrb[0].mxu0
        %v423 = vadd.f32 %v342, %v422
        %v424 = vpop.f32.mrb[0].mxu0
        %425 = vdwg.mxu0
        %426 = vmax.xlane.f32.xlu0 %v418
        %v427 = vpop.xlane.xlu0 %426
        %428 = vmax.xlane.f32.xlu0 %v423
        %v429 = vpop.xlane.xlu0 %428
        %v430 = vsub.f32 %v418, %v427
        %v431 = vsub.f32 %v423, %v429
        %v432 = vmul.f32 %v430, 1.442695
        %v433 = vpow.pop %v432
        %v434 = vmul.f32 %v431, 1.442695
        %v435 = vpow.pop %v434
        %436 = vadd.xlane.f32.xlu0 %v433
        %v437 = vpop.xlane.xlu0 %436
        %438 = vadd.xlane.f32.xlu0 %v435
        %v439 = vpop.xlane.xlu0 %438
        %v440 = vrcp.pop %v437
        %v441 = vmul.f32 %v433, %v440
        %v442 = vrcp.pop %v439
        %v443 = vmul.f32 %v435, %v442
        %444 = vmatprep.subr.mxu0 0.0
        %445 = vmatpush1.xpose.msra.mxu0 %v441
        %446 = vmatprep.subr.mxu0 0.0
        %447 = vmatpush1.xpose.msra.mxu0 %v443
        %448 = vmatprep.subr.mxu0 0.0
        %449 = vmatpush1.xpose.msra.mxu0 0.0
        %450 = vmatprep.subr.mxu0 0.0
        %451 = vmatpush1.xpose.msra.mxu0 0.0
        %452 = vmatprep.subr.mxu0 0.0
        %453 = vmatpush1.xpose.msra.mxu0 0.0
        %454 = vmatprep.subr.mxu0 0.0
        %455 = vmatpush1.xpose.msra.mxu0 0.0
        %456 = vmatprep.subr.mxu0 0.0
        %457 = vmatpush1.xpose.msra.mxu0 0.0
        %458 = vmatprep.subr.mxu0 0.0
        %459 = vmatpush1.xpose.msra.mxu0 0.0
        %460 = vmatprep.subr.mxu0 0.0
        %461 = vmatpush1.xpose.msra.mxu0 0.0
        %462 = vmatprep.subr.mxu0 0.0
        %463 = vmatpush1.xpose.msra.mxu0 0.0
        %464 = vmatprep.subr.mxu0 0.0
        %465 = vmatpush1.xpose.msra.mxu0 0.0
        %466 = vmatprep.subr.mxu0 0.0
        %467 = vmatpush1.xpose.msra.mxu0 0.0
        %468 = vmatprep.subr.mxu0 0.0
        %469 = vmatpush1.xpose.msra.mxu0 0.0
        %470 = vmatprep.subr.mxu0 0.0
        %471 = vmatpush1.xpose.msra.mxu0 0.0
        %472 = vmatprep.subr.mxu0 0.0
        %473 = vmatpush1.xpose.msra.mxu0 0.0
        %474 = vmatprep.subr.mxu0 0.0
        %475 = vmatpush1.xpose.msra.mxu0 0.0
        %476 = vmatprep.subr.mxu0 0.0
        %477 = vmatpush1.xpose.msra.mxu0 0.0
        %478 = vmatprep.subr.mxu0 0.0
        %479 = vmatpush1.xpose.msra.mxu0 0.0
        %480 = vmatprep.subr.mxu0 0.0
        %481 = vmatpush1.xpose.msra.mxu0 0.0
        %482 = vmatprep.subr.mxu0 0.0
        %483 = vmatpush1.xpose.msra.mxu0 0.0
        %484 = vmatprep.subr.mxu0 0.0
        %485 = vmatpush1.xpose.msra.mxu0 0.0
        %486 = vmatprep.subr.mxu0 0.0
        %487 = vmatpush1.xpose.msra.mxu0 0.0
        %488 = vmatprep.subr.mxu0 0.0
        %489 = vmatpush1.xpose.msra.mxu0 0.0
        %490 = vmatprep.subr.mxu0 0.0
        %491 = vmatpush1.xpose.msra.mxu0 0.0
        %492 = vmatprep.subr.mxu0 0.0
        %493 = vmatpush1.xpose.msra.mxu0 0.0
        %494 = vmatprep.subr.mxu0 0.0
        %495 = vmatpush1.xpose.msra.mxu0 0.0
        %496 = vmatprep.subr.mxu0 0.0
        %497 = vmatpush1.xpose.msra.mxu0 0.0
        %498 = vmatprep.subr.mxu0 0.0
        %499 = vmatpush1.xpose.msra.mxu0 0.0
        %500 = vmatprep.subr.mxu0 0.0
        %501 = vmatpush1.xpose.msra.mxu0 0.0
        %502 = vmatprep.subr.mxu0 0.0
        %503 = vmatpush1.xpose.msra.mxu0 0.0
        %504 = vmatprep.subr.mxu0 0.0
        %505 = vmatpush1.xpose.msra.mxu0 0.0
        %506 = vmatprep.subr.mxu0 0.0
        %507 = vmatpush1.xpose.msra.mxu0 0.0
        %508 = vmatprep.mubr.f32.mxu0 0.0
        %509 = vmatmul.mubr.f32.gmra.mrb[0].mxu0 %v302
        %v510 = vpop.f32.mrb[0].mxu0
        %v511 = vadd.f32 0.0, %v510
        %v512 = vpop.f32.mrb[0].mxu0
        %513 = vdwg.mxu0
        %vm514 = vcmask 130048
        %515 = vst.msk [vmem:[%s283] sm:$0xff] %vm514, %v511
        %v516 = vld [vmem:[%s297] sm:$0x7]
        %517 = vmatprep.subr.mxu0 0.0
        %518 = vmatpush1.xpose.msra.mxu0 %v441
        %519 = vmatprep.subr.mxu0 0.0
        %520 = vmatpush1.xpose.msra.mxu0 %v443
        %521 = vmatprep.subr.mxu0 0.0
        %522 = vmatpush1.xpose.msra.mxu0 0.0
        %523 = vmatprep.subr.mxu0 0.0
        %524 = vmatpush1.xpose.msra.mxu0 0.0
        %525 = vmatprep.subr.mxu0 0.0
        %526 = vmatpush1.xpose.msra.mxu0 0.0
        %527 = vmatprep.subr.mxu0 0.0
        %528 = vmatpush1.xpose.msra.mxu0 0.0
        %529 = vmatprep.subr.mxu0 0.0
        %530 = vmatpush1.xpose.msra.mxu0 0.0
        %531 = vmatprep.subr.mxu0 0.0
        %532 = vmatpush1.xpose.msra.mxu0 0.0
        %533 = vmatprep.subr.mxu0 0.0
        %534 = vmatpush1.xpose.msra.mxu0 0.0
        %535 = vmatprep.subr.mxu0 0.0
        %536 = vmatpush1.xpose.msra.mxu0 0.0
        %537 = vmatprep.subr.mxu0 0.0
        %538 = vmatpush1.xpose.msra.mxu0 0.0
        %539 = vmatprep.subr.mxu0 0.0
        %540 = vmatpush1.xpose.msra.mxu0 0.0
        %541 = vmatprep.subr.mxu0 0.0
        %542 = vmatpush1.xpose.msra.mxu0 0.0
        %543 = vmatprep.subr.mxu0 0.0
        %544 = vmatpush1.xpose.msra.mxu0 0.0
        %545 = vmatprep.subr.mxu0 0.0
        %546 = vmatpush1.xpose.msra.mxu0 0.0
        %547 = vmatprep.subr.mxu0 0.0
        %548 = vmatpush1.xpose.msra.mxu0 0.0
        %549 = vmatprep.subr.mxu0 0.0
        %550 = vmatpush1.xpose.msra.mxu0 0.0
        %551 = vmatprep.subr.mxu0 0.0
        %552 = vmatpush1.xpose.msra.mxu0 0.0
        %553 = vmatprep.subr.mxu0 0.0
        %554 = vmatpush1.xpose.msra.mxu0 0.0
        %555 = vmatprep.subr.mxu0 0.0
        %556 = vmatpush1.xpose.msra.mxu0 0.0
        %557 = vmatprep.subr.mxu0 0.0
        %558 = vmatpush1.xpose.msra.mxu0 0.0
        %559 = vmatprep.subr.mxu0 0.0
        %560 = vmatpush1.xpose.msra.mxu0 0.0
        %561 = vmatprep.subr.mxu0 0.0
        %562 = vmatpush1.xpose.msra.mxu0 0.0
        %563 = vmatprep.subr.mxu0 0.0
        %564 = vmatpush1.xpose.msra.mxu0 0.0
        %565 = vmatprep.subr.mxu0 0.0
        %566 = vmatpush1.xpose.msra.mxu0 0.0
        %567 = vmatprep.subr.mxu0 0.0
        %568 = vmatpush1.xpose.msra.mxu0 0.0
        %569 = vmatprep.subr.mxu0 0.0
        %570 = vmatpush1.xpose.msra.mxu0 0.0
        %571 = vmatprep.subr.mxu0 0.0
        %572 = vmatpush1.xpose.msra.mxu0 0.0
        %573 = vmatprep.subr.mxu0 0.0
        %574 = vmatpush1.xpose.msra.mxu0 0.0
        %575 = vmatprep.subr.mxu0 0.0
        %576 = vmatpush1.xpose.msra.mxu0 0.0
        %577 = vmatprep.subr.mxu0 0.0
        %578 = vmatpush1.xpose.msra.mxu0 0.0
        %579 = vmatprep.subr.mxu0 0.0
        %580 = vmatpush1.xpose.msra.mxu0 0.0
        %581 = vmatprep.mubr.f32.mxu0 0.0
        %582 = vmatmul.mubr.f32.gmra.mrb[0].mxu0 %v516
        %v583 = vpop.f32.mrb[0].mxu0
        %v584 = vadd.f32 0.0, %v583
        %v585 = vpop.f32.mrb[0].mxu0
        %586 = vdwg.mxu0
        %vm587 = vcmask 124928
        %588 = vst.msk [vmem:[%s301] sm:$0x7] %vm587, %v584
        %s589 = sand.u32 %s166, 1
        %s590 = scalar_lea.sflag [#allocation3], %s589
        %s591 = sand.u32 %s166, 1
        %s592 = smul.addr %s591, 8
        %s593 = scalar_lea.vmem [#allocation2], %s592
        %p594 = scmp.lt.s32.totalorder %s22, 1
        %s595 = scalar_select %p594, %s22, 1
        %s596 = smul.addr %s595, 4
        %s597 = scalar_lea.vmem %s7, %s596
        // Predicated region
        $region45: #{tpu_custom_call.1} parent=43 // pred_check
          %p598 = pneg %p176
        $region46: #{tpu_custom_call.1} parent=43 // pred_check_branch
          %600 = sbr.rel (%p598) target = $region48
        $region47: #{tpu_custom_call.1} parent=43 // pred_region
          %s602 = ssub.s32 128, 128
          %603 = vsyncadd %s590, %s602
          %s604 = smul.addr %s22, 128
          %s605 = scalar_lea.hbm %s6, %s604
          %s607 = sshll.u32 %s593, 4
          %s608 = int_to_ptr.vmem [resolvable:$true] %s607
          %610 = dma.vmem_to_hbm [thread:$0]  %s608, 128, %s605, %s590
        $region48: #{tpu_custom_call.1} parent=43 // pred_fallthru
          _
        // Predicated region
        $region49: #{tpu_custom_call.1} parent=43 // pred_check
          %p611 = pneg %p202
        $region50: #{tpu_custom_call.1} parent=43 // pred_check_branch
          %613 = sbr.rel (%p611) target = $region52
        $region51: #{tpu_custom_call.1} parent=43 // pred_region
          _
        $region52: #{tpu_custom_call.1} parent=43 // pred_fallthru
          _
      $region44: #{tpu_custom_call.1} parent=5 // pred_fallthru
        _
      %p614 = scmp.le.s32.totalorder 2, %s17
      // Predicated region
      $region53: #{tpu_custom_call.1} parent=5 // pred_check
        %p615 = pneg %p614
      $region54: #{tpu_custom_call.1} parent=5 // pred_check_branch
        %617 = sbr.rel (%p615) target = $region56
      $region55: #{tpu_custom_call.1} parent=5 // pred_region
        %s618 = ssub.s32 %s17, 2
        // Predicated region
        $region57: #{tpu_custom_call.1} parent=55 // pred_check
          %p619 = pneg %p182
        $region58: #{tpu_custom_call.1} parent=55 // pred_check_branch
          %621 = sbr.rel (%p619) target = $region60
        $region59: #{tpu_custom_call.1} parent=55 // pred_region
          %s622 = sand.u32 %s167, 1
          %s623 = scalar_lea.sflag [#allocation3], %s622
          %s624 = sand.u32 %s167, 1
          %s625 = smul.addr %s624, 8
          %s626 = scalar_lea.vmem [#allocation2], %s625
          %627 = dma.done %s623, 128
        $region60: #{tpu_custom_call.1} parent=55 // pred_fallthru
          _
        // Predicated region
        $region61: #{tpu_custom_call.1} parent=55 // pred_check
          %p628 = pneg %p208
        $region62: #{tpu_custom_call.1} parent=55 // pred_check_branch
          %630 = sbr.rel (%p628) target = $region64
        $region63: #{tpu_custom_call.1} parent=55 // pred_region
          %p631 = scmp.lt.s32.totalorder %s23, 1
          %s632 = scalar_select %p631, %s23, 1
          %s633 = smul.addr %s632, 4
          %s634 = scalar_lea.vmem %s7, %s633
        $region64: #{tpu_custom_call.1} parent=55 // pred_fallthru
          _
      $region56: #{tpu_custom_call.1} parent=5 // pred_fallthru
        _
    $region6: #{tpu_custom_call.1} parent=1 // loop_footer
      %s21 = sadd.s32 1, %s17
    $region7: #{tpu_custom_call.1} parent=1 // loop_footer_branch
      %16 = sbr.rel target = $region3
    $region8: #{tpu_custom_call.1} parent=1 // loop_exit
      _
    %635 = vsyncpa [#allocation3], 1
    %s636 = scalar_lea.sflag [#allocation3], 1
    %637 = vsyncpa %s636, 1

</llo_original>
